<compile_context>
chip_gen: v7x
topology: tpu7x:2x2x1
jax: 0.10.0
libtpu: 0.0.40
codegen_flags: <defaults>
</compile_context>

<pallas_src>
import functools

import jax
import jax.numpy as jnp
from jax import lax
from jax.experimental import pallas as pl
from jax.experimental.pallas import tpu as pltpu


def _ceil_to(x, m):
    return ((x + m - 1) // m) * m


def _warp_kernel(x_min, z_min, x_max, z_max, res, H, W, n_tile, mxu_dtype,
                 T_sm, tgt_ref, src_ref, out_ref):
    """One (batch, output-pixel-tile) grid step.

    T_sm   : (B, 16)   SMEM (scalar-prefetched), row-major flattened 4x4 T
    tgt_ref: (1, 1, N) VMEM, target height map for this output-pixel tile
    src_ref: (1, H, W) VMEM, full source BEV image (resident across tiles)
    out_ref: (1, 1, N) VMEM, warped source for this output-pixel tile
    """
    b = pl.program_id(0)
    t = pl.program_id(1)

    # Trace-time constants.
    sx = float(W) / (x_max - x_min)        # BEV x -> source pixel-x scale
    sz = float(H) / (z_max - z_min)        # BEV z -> source pixel-y scale
    cx0 = x_min + 0.5 * res                # cell centre of column 0
    cz0 = z_min + 0.5 * res                # cell centre of row 0

    def tm(i, j):                          # SMEM scalar read of T[b, i, j]
        return T_sm[b, 4 * i + j]

    # Per-batch scalar affine coefficients (a handful of scalar ops):
    #   x = cx0 + res*col, z = cz0 + res*row, p' = T[:3,:3] p + T[:3,3]
    #   ix = sx*(x' - x_min) - 0.5, iy = sz*(z' - z_min) - 0.5
    # (align_corners=False pixel coordinates of grid_sample).
    ax_c = sx * tm(0, 0) * res
    ax_r = sx * tm(0, 2) * res
    ax_y = sx * tm(0, 1)
    ax_0 = sx * (tm(0, 0) * cx0 + tm(0, 2) * cz0 + tm(0, 3) - x_min) - 0.5

    ay_c = sz * tm(2, 0) * res
    ay_r = sz * tm(2, 2) * res
    ay_y = sz * tm(2, 1)
    ay_0 = sz * (tm(2, 0) * cx0 + tm(2, 2) * cz0 + tm(2, 3) - z_min) - 0.5

    # Flat output-pixel index of every lane in this tile, rebuilt in-kernel
    # (no col/row HBM streams).  f32 div/mod with a +-1 fix-up is exact for
    # HW < 2^24.
    lane = lax.broadcasted_iota(jnp.int32, (1, n_tile), 1)
    flat = (t * n_tile + lane).astype(jnp.float32)         # (1, N)
    w_f = float(W)
    row = jnp.floor(flat * (1.0 / W))
    col = flat - row * w_f
    neg = col < 0.0
    row = jnp.where(neg, row - 1.0, row)
    col = jnp.where(neg, col + w_f, col)
    over = col >= w_f
    row = jnp.where(over, row + 1.0, row)
    col = jnp.where(over, col - w_f, col)

    y = tgt_ref[0]                                          # (1, N) heights
    ix = ax_c * col + ax_r * row + ax_y * y + ax_0          # source pixel-x
    iy = ay_c * col + ay_r * row + ay_y * y + ay_0          # source pixel-y

    src = src_ref[0]                                        # (H, W)

    def tent(coord, n):
        # Separable bilinear tent weights; taps outside [0, n) get weight 0
        # == grid_sample zeros padding.  Built at full (n, N) shape in f32.
        taps = lax.broadcasted_iota(jnp.int32, (n, n_tile), 0).astype(jnp.float32)
        return jnp.maximum(1.0 - jnp.abs(coord - taps), 0.0)

    # grid_sample(bilinear, zeros):
    #   out[o] = sum_r wy[r, o] * sum_c src[r, c] * wx[c, o]
    # The MXU contracts over the LARGER of (H, W); the VPU multiply + XLU
    # sublane reduce (stage 2) runs over the smaller one.  Stage-2 weights
    # are built only after the dot so the stage-1 slab is dead first.
    if W >= H:
        wx = tent(ix, W)                                    # (W, N) f32
        inner = jnp.dot(src.astype(mxu_dtype), wx.astype(mxu_dtype),
                        preferred_element_type=jnp.float32)  # (H, N) f32
        wy = tent(iy, H)                                    # (H, N) f32
        out_ref[0] = jnp.sum(wy * inner, axis=0, keepdims=True)
    else:
        wy = tent(iy, H)                                    # (H, N) f32
        inner = lax.dot_general(                            # contract over H
            src.astype(mxu_dtype), wy.astype(mxu_dtype),
            dimension_numbers=(((0,), (0,)), ((), ())),
            preferred_element_type=jnp.float32)             # (W, N) f32
        wx = tent(ix, W)                                    # (W, N) f32
        out_ref[0] = jnp.sum(wx * inner, axis=0, keepdims=True)


class BevToBevWarper:
    """JAX/Pallas port of the PyTorch BevToBevWarper (no learnable params)."""

    def __init__(self, extents, resolution, n_tile=1024, mxu_dtype=jnp.bfloat16):
        # extents = (x_min, z_min, x_max, z_max).  n_tile: sweep up to 2048 on
        # v6e/v5e (128 MiB VMEM); 1024 is v7x-safe.  mxu_dtype=jnp.float32
        # gives a bit-accurate (slower) MXU path for validation.
        self.extents = tuple(float(e) for e in extents)
        self.resolution = float(resolution)
        self.n_tile = int(n_tile)
        self.mxu_dtype = mxu_dtype

    def __call__(self, bev_src_height_map, bev_tgt_height_map, T):
        B, C, H, W = bev_src_height_map.shape
        assert C == 1, "source bev height map must have 1 channel"
        assert bev_tgt_height_map.shape == (B, 1, H, W)
        HW = H * W
        x_min, z_min, x_max, z_max = self.extents

        # ---- output-pixel tile selection --------------------------------
        cap = min(self.n_tile, _ceil_to(HW, 128))
        if B == 1 and _ceil_to(HW, 128) > 128:
            # v7x has 2 TensorCores; with B == 1 keep >= 2 tiles so the tile
            # axis (marked "parallel") can shard across them.
            cap = min(cap, _ceil_to((HW + 1) // 2, 128))
        cap = max(_ceil_to(cap, 128), 128)

        # Prefer a 128-multiple tile that divides HW -> no host-side pad and
        # no output-slice copy; otherwise fall back to padding the last tile.
        n_tile = None
        for cand in range(cap, 0, -128):
            if HW % cand == 0:
                n_tile = cand
                break
        if n_tile is None:
            n_tile = cap
        hw_pad = _ceil_to(HW, n_tile)
        num_tiles = hw_pad // n_tile
        pad = hw_pad - HW

        src_f = bev_src_height_map.reshape(B, H, W).astype(jnp.float32)
        tgt_f = bev_tgt_height_map.reshape(B, 1, HW).astype(jnp.float32)
        T_f = T.reshape(B, 16).astype(jnp.float32)
        if pad:
            tgt_f = jnp.pad(tgt_f, ((0, 0), (0, 0), (0, pad)))

        kernel = functools.partial(_warp_kernel, x_min, z_min, x_max, z_max,
                                   self.resolution, H, W, n_tile,
                                   self.mxu_dtype)

        pix_spec = pl.BlockSpec((1, 1, n_tile), lambda b, t, Tsm: (b, 0, t))
        # src index_map ignores the tile axis -> block stays resident in VMEM
        # across all output tiles of a batch (no redundant HBM->VMEM DMA).
        # TODO(synk): on v7x pass pipeline_mode=pl.Buffered(1) here to avoid
        # double-buffering the batch-resident source block (extra H*W*4 B).
        src_spec = pl.BlockSpec((1, H, W), lambda b, t, Tsm: (b, 0, 0))

        # Explicit scoped-VMEM budget sized from the working set:
        # double-buffered src + tgt/out tiles, f32 weight slabs, f32 inner,
        # bf16 copies of the stage-1 operands.
        big, small = max(H, W), min(H, W)
        vmem_work = (4 * (2 * H * W + 4 * n_tile + n_tile * (big + 2 * small))
                     + 2 * (H * W + big * n_tile))
        vmem_limit = int(min(max(2 * vmem_work + (8 << 20), 32 << 20), 64 << 20))

        out = pl.pallas_call(
            kernel,
            out_shape=jax.ShapeDtypeStruct((B, 1, hw_pad), jnp.float32),
            grid_spec=pltpu.PrefetchScalarGridSpec(
                num_scalar_prefetch=1,          # T lands in SMEM before grid
                grid=(B, num_tiles),            # batch outer, pixel tile inner
                in_specs=[pix_spec, src_spec],
                out_specs=pix_spec,
            ),
            compiler_params=pltpu.CompilerParams(
                dimension_semantics=("parallel", "parallel"),
                vmem_limit_bytes=vmem_limit),
        )(T_f, tgt_f, src_f)
        if pad:
            out = out[:, :, :HW]
        return out.reshape(B, 1, H, W)


def _reference_forward(bev_src, bev_tgt, T, extents, resolution):
    """Pure-JAX reference (explicit gather bilinear sampling) for validation."""
    B, _, H, W = bev_src.shape
    x_min, z_min, x_max, z_max = extents
    jj, ii = jnp.meshgrid(jnp.arange(W, dtype=jnp.float32),
                          jnp.arange(H, dtype=jnp.float32))
    x = x_min + (jj + 0.5) * resolution
    z = z_min + (ii + 0.5) * resolution

    def one(src, tgt, Tb):
        y = tgt[0]
        xp = Tb[0, 0] * x + Tb[0, 1] * y + Tb[0, 2] * z + Tb[0, 3]
        zp = Tb[2, 0] * x + Tb[2, 1] * y + Tb[2, 2] * z + Tb[2, 3]
        u = 2.0 * (xp - x_min) / (x_max - x_min) - 1.0
        v = 2.0 * (zp - z_min) / (z_max - z_min) - 1.0
        ix = ((u + 1.0) * W - 1.0) * 0.5
        iy = ((v + 1.0) * H - 1.0) * 0.5
        img = src[0]
        x0 = jnp.floor(ix)
        y0 = jnp.floor(iy)

        def gat(yy, xx):
            valid = (xx >= 0) & (xx < W) & (yy >= 0) & (yy < H)
            xi = jnp.clip(xx, 0, W - 1).astype(jnp.int32)
            yi = jnp.clip(yy, 0, H - 1).astype(jnp.int32)
            return jnp.where(valid, img[yi, xi], 0.0)

        wx1 = ix - x0
        wx0 = 1.0 - wx1
        wy1 = iy - y0
        wy0 = 1.0 - wy1
        out = (gat(y0, x0) * wy0 * wx0 + gat(y0, x0 + 1) * wy0 * wx1 +
               gat(y0 + 1, x0) * wy1 * wx0 + gat(y0 + 1, x0 + 1) * wy1 * wx1)
        return out[None]

    return jax.vmap(one)(bev_src, bev_tgt, T)


def _make_T(b):
    th = 0.05 * (b + 1)            # small yaw rotation + translation
    c, s = jnp.cos(th), jnp.sin(th)
    return jnp.array([[c, 0.0, s, 0.5 * (b + 1)],
                      [0.0, 1.0, 0.0, 0.0],
                      [-s, 0.0, c, -0.7 * (b + 1)],
                      [0.0, 0.0, 0.0, 1.0]], jnp.float32)


def _run_case(extents, resolution, B, seed):
    x_min, z_min, x_max, z_max = extents
    W = int(round((x_max - x_min) / resolution))
    H = int(round((z_max - z_min) / resolution))

    key = jax.random.PRNGKey(seed)
    k1, k2 = jax.random.split(key)
    bev_src = jax.random.normal(k1, (B, 1, H, W), jnp.float32)
    bev_tgt = 0.5 * jax.random.normal(k2, (B, 1, H, W), jnp.float32)
    T = jnp.stack([_make_T(b) for b in range(B)])

    ref = _reference_forward(bev_src, bev_tgt, T, extents, resolution)

    # Bit-accurate f32 MXU path: tight tolerance vs. the gather reference.
    warper_f32 = BevToBevWarper(extents, resolution, mxu_dtype=jnp.float32)
    out_f32 = jax.block_until_ready(warper_f32(bev_src, bev_tgt, T))
    assert out_f32.shape == (B, 1, H, W)
    assert jnp.allclose(out_f32, ref, atol=1e-4, rtol=1e-4), (
        float(jnp.max(jnp.abs(out_f32 - ref))))

    # Default fast path: bf16 MXU operands, f32 accumulate (tent weights
    # quantize to ~0.4% relative error -> loose tolerance).
    warper_bf16 = BevToBevWarper(extents, resolution)
    out_bf16 = jax.block_until_ready(warper_bf16(bev_src, bev_tgt, T))
    assert out_bf16.shape == (B, 1, H, W)
    assert jnp.allclose(out_bf16, ref, atol=5e-2, rtol=5e-2), (
        float(jnp.max(jnp.abs(out_bf16 - ref))))


if __name__ == "__main__":
    # Case A: square grid (W >= H branch -> MXU contracts over W).
    _run_case(extents=(-8.0, 0.0, 8.0, 16.0), resolution=1.0, B=2, seed=0)
    # Case B: tall grid, H > W (dot_general branch -> MXU contracts over H).
    _run_case(extents=(-8.0, 0.0, 8.0, 32.0), resolution=1.0, B=2, seed=0)
    print("KERNEL_OK")
</pallas_src>

<mosaic_0001>
module attributes {stable_mosaic.version = 11 : i64} {
  func.func @_warp_kernel(%arg0: i32, %arg1: i32, %arg2: memref<2x16xf32, #tpu.memory_space<smem>>, %arg3: memref<1x1x256xf32, #tpu.memory_space<vmem>>, %arg4: memref<1x16x16xf32, #tpu.memory_space<vmem>>, %arg5: memref<1x1x256xf32, #tpu.memory_space<vmem>>) attributes {dimension_semantics = [#tpu.dimension_semantics<parallel>, #tpu.dimension_semantics<parallel>], iteration_bounds = array<i64: 2, 1>, scalar_prefetch = 1 : i64, scratch_operands = 0 : i64, tpu.core_type = #tpu.core_type<tc>, window_params = [{transform_indices = @transform_0, window_bounds = array<i64: 1, 1, 256>}, {transform_indices = @transform_1, window_bounds = array<i64: 1, 16, 16>}, {transform_indices = @transform_2, window_bounds = array<i64: 1, 1, 256>}]} {
    %0 = arith.index_cast %arg0 : i32 to index
    %c0 = arith.constant 0 : index
    %1 = memref.load %arg2[%0, %c0] : memref<2x16xf32, #tpu.memory_space<smem>>
    %cst = arith.constant 1.000000e+00 : f32
    %2 = arith.mulf %cst, %1 : f32
    %cst_0 = arith.constant 1.000000e+00 : f32
    %3 = arith.mulf %2, %cst_0 : f32
    %4 = arith.index_cast %arg0 : i32 to index
    %c2 = arith.constant 2 : index
    %5 = memref.load %arg2[%4, %c2] : memref<2x16xf32, #tpu.memory_space<smem>>
    %cst_1 = arith.constant 1.000000e+00 : f32
    %6 = arith.mulf %cst_1, %5 : f32
    %cst_2 = arith.constant 1.000000e+00 : f32
    %7 = arith.mulf %6, %cst_2 : f32
    %8 = arith.index_cast %arg0 : i32 to index
    %c1 = arith.constant 1 : index
    %9 = memref.load %arg2[%8, %c1] : memref<2x16xf32, #tpu.memory_space<smem>>
    %cst_3 = arith.constant 1.000000e+00 : f32
    %10 = arith.mulf %cst_3, %9 : f32
    %11 = arith.index_cast %arg0 : i32 to index
    %c0_4 = arith.constant 0 : index
    %12 = memref.load %arg2[%11, %c0_4] : memref<2x16xf32, #tpu.memory_space<smem>>
    %cst_5 = arith.constant -7.500000e+00 : f32
    %13 = arith.mulf %12, %cst_5 : f32
    %14 = arith.index_cast %arg0 : i32 to index
    %c2_6 = arith.constant 2 : index
    %15 = memref.load %arg2[%14, %c2_6] : memref<2x16xf32, #tpu.memory_space<smem>>
    %cst_7 = arith.constant 5.000000e-01 : f32
    %16 = arith.mulf %15, %cst_7 : f32
    %17 = arith.addf %13, %16 : f32
    %18 = arith.index_cast %arg0 : i32 to index
    %c3 = arith.constant 3 : index
    %19 = memref.load %arg2[%18, %c3] : memref<2x16xf32, #tpu.memory_space<smem>>
    %20 = arith.addf %17, %19 : f32
    %cst_8 = arith.constant -8.000000e+00 : f32
    %21 = arith.subf %20, %cst_8 : f32
    %cst_9 = arith.constant 1.000000e+00 : f32
    %22 = arith.mulf %cst_9, %21 : f32
    %cst_10 = arith.constant 5.000000e-01 : f32
    %23 = arith.subf %22, %cst_10 : f32
    %24 = arith.index_cast %arg0 : i32 to index
    %c8 = arith.constant 8 : index
    %25 = memref.load %arg2[%24, %c8] : memref<2x16xf32, #tpu.memory_space<smem>>
    %cst_11 = arith.constant 1.000000e+00 : f32
    %26 = arith.mulf %cst_11, %25 : f32
    %cst_12 = arith.constant 1.000000e+00 : f32
    %27 = arith.mulf %26, %cst_12 : f32
    %28 = arith.index_cast %arg0 : i32 to index
    %c10 = arith.constant 10 : index
    %29 = memref.load %arg2[%28, %c10] : memref<2x16xf32, #tpu.memory_space<smem>>
    %cst_13 = arith.constant 1.000000e+00 : f32
    %30 = arith.mulf %cst_13, %29 : f32
    %cst_14 = arith.constant 1.000000e+00 : f32
    %31 = arith.mulf %30, %cst_14 : f32
    %32 = arith.index_cast %arg0 : i32 to index
    %c9 = arith.constant 9 : index
    %33 = memref.load %arg2[%32, %c9] : memref<2x16xf32, #tpu.memory_space<smem>>
    %cst_15 = arith.constant 1.000000e+00 : f32
    %34 = arith.mulf %cst_15, %33 : f32
    %35 = arith.index_cast %arg0 : i32 to index
    %c8_16 = arith.constant 8 : index
    %36 = memref.load %arg2[%35, %c8_16] : memref<2x16xf32, #tpu.memory_space<smem>>
    %cst_17 = arith.constant -7.500000e+00 : f32
    %37 = arith.mulf %36, %cst_17 : f32
    %38 = arith.index_cast %arg0 : i32 to index
    %c10_18 = arith.constant 10 : index
    %39 = memref.load %arg2[%38, %c10_18] : memref<2x16xf32, #tpu.memory_space<smem>>
    %cst_19 = arith.constant 5.000000e-01 : f32
    %40 = arith.mulf %39, %cst_19 : f32
    %41 = arith.addf %37, %40 : f32
    %42 = arith.index_cast %arg0 : i32 to index
    %c11 = arith.constant 11 : index
    %43 = memref.load %arg2[%42, %c11] : memref<2x16xf32, #tpu.memory_space<smem>>
    %44 = arith.addf %41, %43 : f32
    %cst_20 = arith.constant 0.000000e+00 : f32
    %45 = arith.subf %44, %cst_20 : f32
    %cst_21 = arith.constant 1.000000e+00 : f32
    %46 = arith.mulf %cst_21, %45 : f32
    %cst_22 = arith.constant 5.000000e-01 : f32
    %47 = arith.subf %46, %cst_22 : f32
    %48 = tpu.iota {dimensions = array<i32: 1>} : vector<1x256xi32>
    %c256_i32 = arith.constant 256 : i32
    %49 = arith.muli %arg1, %c256_i32 : i32
    %50 = vector.broadcast %49 : i32 to vector<1x256xi32>
    %51 = arith.addi %50, %48 : vector<1x256xi32>
    %52 = arith.sitofp %51 : vector<1x256xi32> to vector<1x256xf32>
    %cst_23 = arith.constant 6.250000e-02 : f32
    %53 = vector.broadcast %cst_23 : f32 to vector<1x256xf32>
    %54 = arith.mulf %52, %53 : vector<1x256xf32>
    %55 = math.floor %54 : vector<1x256xf32>
    %cst_24 = arith.constant 1.600000e+01 : f32
    %56 = vector.broadcast %cst_24 : f32 to vector<1x256xf32>
    %57 = arith.mulf %55, %56 : vector<1x256xf32>
    %58 = arith.subf %52, %57 : vector<1x256xf32>
    %cst_25 = arith.constant 0.000000e+00 : f32
    %59 = vector.broadcast %cst_25 : f32 to vector<1x256xf32>
    %60 = arith.cmpf olt, %58, %59 : vector<1x256xf32>
    %cst_26 = arith.constant 1.000000e+00 : f32
    %61 = vector.broadcast %cst_26 : f32 to vector<1x256xf32>
    %62 = arith.subf %55, %61 : vector<1x256xf32>
    %63 = arith.select %60, %62, %55 : vector<1x256xi1>, vector<1x256xf32>
    %cst_27 = arith.constant 1.600000e+01 : f32
    %64 = vector.broadcast %cst_27 : f32 to vector<1x256xf32>
    %65 = arith.addf %58, %64 : vector<1x256xf32>
    %66 = arith.select %60, %65, %58 : vector<1x256xi1>, vector<1x256xf32>
    %cst_28 = arith.constant 1.600000e+01 : f32
    %67 = vector.broadcast %cst_28 : f32 to vector<1x256xf32>
    %68 = arith.cmpf oge, %66, %67 : vector<1x256xf32>
    %cst_29 = arith.constant 1.000000e+00 : f32
    %69 = vector.broadcast %cst_29 : f32 to vector<1x256xf32>
    %70 = arith.addf %63, %69 : vector<1x256xf32>
    %71 = arith.select %68, %70, %63 : vector<1x256xi1>, vector<1x256xf32>
    %cst_30 = arith.constant 1.600000e+01 : f32
    %72 = vector.broadcast %cst_30 : f32 to vector<1x256xf32>
    %73 = arith.subf %66, %72 : vector<1x256xf32>
    %74 = arith.select %68, %73, %66 : vector<1x256xi1>, vector<1x256xf32>
    %c0_31 = arith.constant 0 : index
    %c0_32 = arith.constant 0 : index
    %c0_33 = arith.constant 0 : index
    %75 = vector.load %arg3[%c0_31, %c0_32, %c0_33] : memref<1x1x256xf32, #tpu.memory_space<vmem>>, vector<1x1x256xf32>
    %76 = vector.shape_cast %75 : vector<1x1x256xf32> to vector<1x256xf32>
    %77 = vector.broadcast %3 : f32 to vector<1x256xf32>
    %78 = arith.mulf %77, %74 : vector<1x256xf32>
    %79 = vector.broadcast %7 : f32 to vector<1x256xf32>
    %80 = arith.mulf %79, %71 : vector<1x256xf32>
    %81 = arith.addf %78, %80 : vector<1x256xf32>
    %82 = vector.broadcast %10 : f32 to vector<1x256xf32>
    %83 = arith.mulf %82, %76 : vector<1x256xf32>
    %84 = arith.addf %81, %83 : vector<1x256xf32>
    %85 = vector.broadcast %23 : f32 to vector<1x256xf32>
    %86 = arith.addf %84, %85 : vector<1x256xf32>
    %87 = vector.broadcast %27 : f32 to vector<1x256xf32>
    %88 = arith.mulf %87, %74 : vector<1x256xf32>
    %89 = vector.broadcast %31 : f32 to vector<1x256xf32>
    %90 = arith.mulf %89, %71 : vector<1x256xf32>
    %91 = arith.addf %88, %90 : vector<1x256xf32>
    %92 = vector.broadcast %34 : f32 to vector<1x256xf32>
    %93 = arith.mulf %92, %76 : vector<1x256xf32>
    %94 = arith.addf %91, %93 : vector<1x256xf32>
    %95 = vector.broadcast %47 : f32 to vector<1x256xf32>
    %96 = arith.addf %94, %95 : vector<1x256xf32>
    %c0_34 = arith.constant 0 : index
    %c0_35 = arith.constant 0 : index
    %c0_36 = arith.constant 0 : index
    %97 = vector.load %arg4[%c0_34, %c0_35, %c0_36] : memref<1x16x16xf32, #tpu.memory_space<vmem>>, vector<1x16x16xf32>
    %98 = vector.shape_cast %97 : vector<1x16x16xf32> to vector<16x16xf32>
    %99 = tpu.iota {dimensions = array<i32: 0>} : vector<16x256xi32>
    %100 = arith.sitofp %99 : vector<16x256xi32> to vector<16x256xf32>
    %101 = vector.broadcast %86 : vector<1x256xf32> to vector<16x256xf32>
    %102 = arith.subf %101, %100 : vector<16x256xf32>
    %103 = math.absf %102 : vector<16x256xf32>
    %cst_37 = arith.constant 1.000000e+00 : f32
    %104 = vector.broadcast %cst_37 : f32 to vector<16x256xf32>
    %105 = arith.subf %104, %103 : vector<16x256xf32>
    %cst_38 = arith.constant 0.000000e+00 : f32
    %106 = vector.broadcast %cst_38 : f32 to vector<16x256xf32>
    %107 = arith.maximumf %105, %106 : vector<16x256xf32>
    %cst_39 = arith.constant dense<0.000000e+00> : vector<16x256xf32>
    %108 = tpu.matmul %98, %107, %cst_39 {dimension_numbers = #tpu.dot_dimension_numbers<[1], [0], [0], [1], [0, 0, 1, 1], [], []>} : vector<16x16xf32>, vector<16x256xf32>, vector<16x256xf32> -> vector<16x256xf32>
    %109 = tpu.iota {dimensions = array<i32: 0>} : vector<16x256xi32>
    %110 = arith.sitofp %109 : vector<16x256xi32> to vector<16x256xf32>
    %111 = vector.broadcast %96 : vector<1x256xf32> to vector<16x256xf32>
    %112 = arith.subf %111, %110 : vector<16x256xf32>
    %113 = math.absf %112 : vector<16x256xf32>
    %cst_40 = arith.constant 1.000000e+00 : f32
    %114 = vector.broadcast %cst_40 : f32 to vector<16x256xf32>
    %115 = arith.subf %114, %113 : vector<16x256xf32>
    %cst_41 = arith.constant 0.000000e+00 : f32
    %116 = vector.broadcast %cst_41 : f32 to vector<16x256xf32>
    %117 = arith.maximumf %115, %116 : vector<16x256xf32>
    %118 = arith.mulf %117, %108 : vector<16x256xf32>
    %cst_42 = arith.constant dense<0.000000e+00> : vector<256xf32>
    %119 = vector.multi_reduction <add>, %118, %cst_42 [0] : vector<16x256xf32> to vector<256xf32>
    %120 = vector.shape_cast %119 : vector<256xf32> to vector<1x256xf32>
    %c0_43 = arith.constant 0 : index
    %c0_44 = arith.constant 0 : index
    %c0_45 = arith.constant 0 : index
    %121 = vector.load %arg5[%c0_43, %c0_44, %c0_45] : memref<1x1x256xf32, #tpu.memory_space<vmem>>, vector<1x1x256xf32>
    %122 = vector.shape_cast %121 : vector<1x1x256xf32> to vector<1x256xf32>
    %123 = vector.shape_cast %120 : vector<1x256xf32> to vector<1x1x256xf32>
    tpu.vector_store %arg5[%c0_43, %c0_44, %c0_45], %123 {strides = array<i32>} : memref<1x1x256xf32, #tpu.memory_space<vmem>>, vector<1x1x256xf32>,
    return
  }
  func.func @transform_0(%arg0: i32, %arg1: i32, %arg2: memref<2x16xf32, #tpu.memory_space<smem>>) -> (i32, i32, i32) {
    %c0_i32 = arith.constant 0 : i32
    %c0_i32_0 = arith.constant 0 : i32
    return %arg0, %c0_i32, %arg1 : i32, i32, i32
  }
  func.func @transform_1(%arg0: i32, %arg1: i32, %arg2: memref<2x16xf32, #tpu.memory_space<smem>>) -> (i32, i32, i32) {
    %c0_i32 = arith.constant 0 : i32
    %c0_i32_0 = arith.constant 0 : i32
    %c0_i32_1 = arith.constant 0 : i32
    return %arg0, %c0_i32, %c0_i32_0 : i32, i32, i32
  }
  func.func @transform_2(%arg0: i32, %arg1: i32, %arg2: memref<2x16xf32, #tpu.memory_space<smem>>) -> (i32, i32, i32) {
    %c0_i32 = arith.constant 0 : i32
    %c0_i32_0 = arith.constant 0 : i32
    return %arg0, %c0_i32, %arg1 : i32, i32, i32
  }
}

</mosaic_0001>

<llo_original>
// kernel: tpu_custom_call.1
$region0: #{tpu_custom_call.1}
  #allocation0 [shape = 'u32[]', space=smem, size = 0x4, offset = 0x4, fixed_abs, tag = 'smem constant byte address 0x4 - core index']
  #allocation1 [shape = 'u32[144,128]{1,0:T(1,128)}', space=vmem, size = 0x12000, scoped, tag = 'internal scratch']
  #allocation2 [shape = 's32[1]{0}', space=sflag, size = 0x4, scoped, tag = 'scoped memory for tpu_custom_call.1']
  #allocation3 [shape = 'u8[1024]{0}', space=smem, size = 0x400, scoped, tag = 'prefetched SMEM operand 0']
  %s0 = inlined_call_operand.hbm [shape: f32[2,16], index: 0, kind: input, shape index: {}]
  %s1 = inlined_call_operand.hbm [shape: f32[2,1,256], index: 1, kind: input, shape index: {}]
  %s2 = inlined_call_operand.hbm [shape: f32[2,16,16], index: 2, kind: input, shape index: {}]
  %s3 = inlined_call_operand.hbm [shape: f32[2,1,256], index: 3, kind: output, shape index: {}]
  %s4 = sld [smem:[#allocation0]]
  $region49: #{tpu_custom_call.1} parent=0
    _
  %s6 = ssub.s32 1, %s4
  %s7 = scalar_select 0, %s6, %s4
  %9 = dma.hbm_to_smem %s0, 32, [#allocation3], [#allocation2]
  %10 = dma.done [#allocation2], 32
  %11 = sfence
  $region1: #{tpu_custom_call.1} parent=0
    #allocation4 [shape = 'u8[2048]{0}', space=vmem, size = 0x800, scoped, tag = 'input window, operand 1']
    #allocation5 [shape = 's32[2]{0}', space=sflag, size = 0x8, scoped, tag = 'scoped memory for tpu_custom_call.1']
    #allocation6 [shape = 's32[2]{0}', space=sflag, size = 0x8, scoped, tag = 'scoped memory for tpu_custom_call.1']
    #allocation7 [shape = 'u8[16384]{0}', space=vmem, size = 0x4000, scoped, tag = 'input window, operand 2']
    #allocation8 [shape = 's32[2]{0}', space=sflag, size = 0x8, scoped, tag = 'scoped memory for tpu_custom_call.1']
    #allocation9 [shape = 'u8[2048]{0}', space=vmem, size = 0x800, scoped, tag = 'output window, operand 0']
    %12 = vsyncpa [#allocation5], 0
    %s13 = scalar_lea.sflag [#allocation5], 1
    %14 = vsyncpa %s13, 0
    %15 = vsyncpa [#allocation8], 0
    %s16 = scalar_lea.sflag [#allocation8], 1
    %17 = vsyncpa %s16, 0
    %18 = vsyncpa [#allocation6], 0
    %s19 = scalar_lea.sflag [#allocation6], 1
    %20 = vsyncpa %s19, 0
    loop: start=0, step=1, limit=4
    $region2: #{tpu_custom_call.1} parent=1 // loop_pre_header
      _
    $region3: #{tpu_custom_call.1} parent=1 // loop_header
      %s22 = sphi 0, %s26
      %p23 = scmp.ge.s32.totalorder %s22, 4
      %s29 = sphi 0, %s41
      %s30 = sphi 0, %s37
      %s31 = sphi 0, %s29
      %s32 = sphi 0, %s30
      %s33 = sphi 0, %s31
      %s34 = sphi 0, %s32
      %s46 = sphi 0, %s48
      %s49 = sphi 0, %s46
      %s50 = sphi 0, %s49
      %s66 = sphi 0, %s50
      %s72 = sphi 0, %s74
      %s75 = sphi 0, %s72
      %s76 = sphi 0, %s75
      %s92 = sphi 0, %s76
      %s100 = sphi 0, %s102
      %s103 = sphi 0, %s100
      %s104 = sphi 0, %s103
      %s120 = sphi 0, %s104
    $region4: #{tpu_custom_call.1} parent=1 // loop_header_branch
      %25 = sbr.rel (%p23) target = $region8
    $region5: #{tpu_custom_call.1} parent=1 // loop_body
      %s27 = ssub.s32 %s22, 1
      %s28 = ssub.s32 %s22, 2
      %s35 = sadd.s32 1, %s30
      %p36 = scmp.ge.s32.totalorder %s35, 1
      %s37 = scalar_select %p36, 0, %s35
      %s38 = sadd.s32 1, %s29
      %s39 = scalar_select %p36, %s38, %s29
      %p40 = scmp.ge.s32.totalorder %s39, 2
      %s41 = scalar_select %p40, 0, %s39
      %s42 = ssub.s32 %s29, %s41
      %s43 = ssub.s32 %s30, %s37
      %s44 = sor.u32 %s42, %s43
      %p45 = scmp.eq.s32.totalorder %s44, 0
      %s47 = sadd.s32 %s46, 1
      %s48 = scalar_select %p45, %s46, %s47
      %p51 = pneg %p45
      %p52 = scmp.eq.s32.totalorder %s22, 1
      %p53 = por %p51, %p52
      %p54 = scmp.ne.s32.totalorder %s46, %s49
      %p55 = scmp.eq.s32.totalorder %s22, 0
      %p56 = por %p54, %p55
      %p57 = scmp.ne.s32.totalorder %s46, %s49
      %p58 = scmp.eq.s32.totalorder %s27, 1
      %p59 = por %p57, %p58
      %p60 = scmp.ne.s32.totalorder %s49, %s50
      %p61 = scmp.eq.s32.totalorder %s27, 0
      %p62 = por %p60, %p61
      %p63 = scmp.ne.s32.totalorder %s49, %s50
      %p64 = scmp.eq.s32.totalorder %s28, 1
      %p65 = por %p63, %p64
      %p67 = scmp.ne.s32.totalorder %s50, %s66
      %p68 = scmp.eq.s32.totalorder %s28, 0
      %p69 = por %p67, %p68
      %s70 = ssub.s32 %s29, %s41
      %p71 = scmp.eq.s32.totalorder %s70, 0
      %s73 = sadd.s32 %s72, 1
      %s74 = scalar_select %p71, %s72, %s73
      %p77 = pneg %p71
      %p78 = scmp.eq.s32.totalorder %s22, 1
      %p79 = por %p77, %p78
      %p80 = scmp.ne.s32.totalorder %s72, %s75
      %p81 = scmp.eq.s32.totalorder %s22, 0
      %p82 = por %p80, %p81
      %p83 = scmp.ne.s32.totalorder %s72, %s75
      %p84 = scmp.eq.s32.totalorder %s27, 1
      %p85 = por %p83, %p84
      %p86 = scmp.ne.s32.totalorder %s75, %s76
      %p87 = scmp.eq.s32.totalorder %s27, 0
      %p88 = por %p86, %p87
      %p89 = scmp.ne.s32.totalorder %s75, %s76
      %p90 = scmp.eq.s32.totalorder %s28, 1
      %p91 = por %p89, %p90
      %p93 = scmp.ne.s32.totalorder %s76, %s92
      %p94 = scmp.eq.s32.totalorder %s28, 0
      %p95 = por %p93, %p94
      %s96 = ssub.s32 %s29, %s41
      %s97 = ssub.s32 %s30, %s37
      %s98 = sor.u32 %s96, %s97
      %p99 = scmp.eq.s32.totalorder %s98, 0
      %s101 = sadd.s32 %s100, 1
      %s102 = scalar_select %p99, %s100, %s101
      %p105 = pneg %p99
      %p106 = scmp.eq.s32.totalorder %s22, 1
      %p107 = por %p105, %p106
      %p108 = scmp.ne.s32.totalorder %s100, %s103
      %p109 = scmp.eq.s32.totalorder %s22, 0
      %p110 = por %p108, %p109
      %p111 = scmp.ne.s32.totalorder %s100, %s103
      %p112 = scmp.eq.s32.totalorder %s27, 1
      %p113 = por %p111, %p112
      %p114 = scmp.ne.s32.totalorder %s103, %s104
      %p115 = scmp.eq.s32.totalorder %s27, 0
      %p116 = por %p114, %p115
      %p117 = scmp.ne.s32.totalorder %s103, %s104
      %p118 = scmp.eq.s32.totalorder %s28, 1
      %p119 = por %p117, %p118
      %p121 = scmp.ne.s32.totalorder %s104, %s120
      %p122 = scmp.eq.s32.totalorder %s28, 0
      %p123 = por %p121, %p122
      %p124 = scmp.le.s32.totalorder 1, %s22
      %p125 = scmp.lt.s32.totalorder %s22, 3
      %p126 = pnand %p124, %p125
      %p127 = pneg %p126
      // Predicated region
      $region9: #{tpu_custom_call.1} parent=5 // pred_check
        _
      $region10: #{tpu_custom_call.1} parent=5 // pred_check_branch
        %129 = sbr.rel (%p126) target = $region12
      $region11: #{tpu_custom_call.1} parent=5 // pred_region
        %s130 = ssub.s32 %s22, 1
      $region12: #{tpu_custom_call.1} parent=5 // pred_fallthru
        _
      %p131 = scmp.lt.s32.totalorder %s22, 2
      // Predicated region
      $region13: #{tpu_custom_call.1} parent=5 // pred_check
        %p132 = pneg %p131
      $region14: #{tpu_custom_call.1} parent=5 // pred_check_branch
        %134 = sbr.rel (%p132) target = $region16
      $region15: #{tpu_custom_call.1} parent=5 // pred_region
        // Predicated region
        $region17: #{tpu_custom_call.1} parent=15 // pred_check
          %p135 = pneg %p56
        $region18: #{tpu_custom_call.1} parent=15 // pred_check_branch
          %137 = sbr.rel (%p135) target = $region20
        $region19: #{tpu_custom_call.1} parent=15 // pred_region
          %s138 = sand.u32 %s46, 1
          %s139 = scalar_lea.sflag [#allocation5], %s138
          %s140 = sand.u32 %s46, 1
          %s141 = smul.addr %s140, 2
          %s142 = scalar_lea.vmem [#allocation4], %s141
          %s143 = smul.u32 2, %s30
          %s145 = ssub.s32 32, 32
          %146 = vsyncadd %s139, %s145
          %s147 = smul.addr %s29, 2
          %s148 = sadd.s32 %s143, %s147
          %s149 = smul.addr %s148, 16
          %s150 = scalar_lea.hbm %s1, %s149
          %s152 = sshll.u32 %s142, 4
          %s153 = int_to_ptr.vmem [resolvable:$true] %s152
          %155 = dma.hbm_to_vmem [thread:$0]  %s150, 32, %s153, %s139
        $region20: #{tpu_custom_call.1} parent=15 // pred_fallthru
          _
        // Predicated region
        $region21: #{tpu_custom_call.1} parent=15 // pred_check
          %p156 = pneg %p82
        $region22: #{tpu_custom_call.1} parent=15 // pred_check_branch
          %158 = sbr.rel (%p156) target = $region24
        $region23: #{tpu_custom_call.1} parent=15 // pred_region
          %s159 = sand.u32 %s72, 1
          %s160 = scalar_lea.sflag [#allocation8], %s159
          %s161 = sand.u32 %s72, 1
          %s162 = smul.addr %s161, 16
          %s163 = scalar_lea.vmem [#allocation7], %s162
          %s165 = ssub.s32 256, 256
          %166 = vsyncadd %s160, %s165
          %s167 = smul.addr %s29, 2
          %s168 = smul.addr %s167, 128
          %s169 = scalar_lea.hbm %s2, %s168
          %s170 = sshll.u32 %s163, 4
          %s171 = int_to_ptr.vmem [resolvable:$true] %s170
          %176 = dma.hbm_to_vmem [thread:$0]  %s169, 256, %s171, %s160, 128, 128, 8
        $region24: #{tpu_custom_call.1} parent=15 // pred_fallthru
          _
      $region16: #{tpu_custom_call.1} parent=5 // pred_fallthru
        _
      %p177 = scmp.le.s32.totalorder 1, %s22
      %p178 = scmp.lt.s32.totalorder %s22, 3
      %p179 = pnand %p177, %p178
      %p180 = pneg %p179
      // Predicated region
      $region25: #{tpu_custom_call.1} parent=5 // pred_check
        _
      $region26: #{tpu_custom_call.1} parent=5 // pred_check_branch
        %182 = sbr.rel (%p179) target = $region28
      $region27: #{tpu_custom_call.1} parent=5 // pred_region
        %s183 = ssub.s32 %s22, 1
        %s184 = sand.u32 %s49, 1
        %s185 = scalar_lea.sflag [#allocation5], %s184
        %s186 = sand.u32 %s49, 1
        %s187 = smul.addr %s186, 2
        %s188 = scalar_lea.vmem [#allocation4], %s187
        // Predicated region
        $region29: #{tpu_custom_call.1} parent=27 // pred_check
          %p189 = pneg %p62
        $region30: #{tpu_custom_call.1} parent=27 // pred_check_branch
          %191 = sbr.rel (%p189) target = $region32
        $region31: #{tpu_custom_call.1} parent=27 // pred_region
          %192 = dma.done %s185, 32
        $region32: #{tpu_custom_call.1} parent=27 // pred_fallthru
          _
        %s193 = sand.u32 %s75, 1
        %s194 = scalar_lea.sflag [#allocation8], %s193
        %s195 = sand.u32 %s75, 1
        %s196 = smul.addr %s195, 16
        %s197 = scalar_lea.vmem [#allocation7], %s196
        // Predicated region
        $region33: #{tpu_custom_call.1} parent=27 // pred_check
          %p198 = pneg %p88
        $region34: #{tpu_custom_call.1} parent=27 // pred_check_branch
          %200 = sbr.rel (%p198) target = $region36
        $region35: #{tpu_custom_call.1} parent=27 // pred_region
          %201 = dma.done %s194, 256
        $region36: #{tpu_custom_call.1} parent=27 // pred_fallthru
          _
        %s202 = sand.u32 %s49, 1
        %s203 = scalar_lea.sflag [#allocation5], %s202
        %s204 = sand.u32 %s49, 1
        %s205 = smul.addr %s204, 2
        %s206 = scalar_lea.vmem [#allocation4], %s205
        %p207 = pneg %p62
        %p208 = pneg %p59
        %s209 = sand.u32 %s75, 1
        %s210 = scalar_lea.sflag [#allocation8], %s209
        %s211 = sand.u32 %s75, 1
        %s212 = smul.addr %s211, 16
        %s213 = scalar_lea.vmem [#allocation7], %s212
        %p214 = pneg %p88
        %p215 = pneg %p85
        %p216 = pneg %p116
        %p217 = pneg %p113
        %s218 = sand.u32 %s103, 1
        %s219 = scalar_lea.sflag [#allocation6], %s218
        %s220 = sand.u32 %s103, 1
        %s221 = smul.addr %s220, 2
        %s222 = scalar_lea.vmem [#allocation9], %s221
        %s223 = smul.u32 2, %s32
        %s224 = smul.u32 2, %s32
        %s225 = smul.u32 %s31, 128
        %s226 = sld [smem:[#allocation3 + %s225]]
        %s227 = sadd.s32 %s225, 2
        %s228 = sld [smem:[#allocation3 + %s227]]
        %s229 = sadd.s32 %s225, 1
        %s230 = sld [smem:[#allocation3 + %s229]]
        %s231 = smul.f32 %s226, -7.5
        %s232 = smul.f32 %s228, 0.5
        %s233 = sadd.f32 %s231, %s232
        %s234 = sadd.s32 %s225, 3
        %s235 = sld [smem:[#allocation3 + %s234]]
        %s236 = sadd.f32 %s233, %s235
        %s237 = ssub.f32 %s236, -8.0
        %s238 = ssub.f32 %s237, 0.5
        %s239 = sadd.s32 %s225, 8
        %s240 = sld [smem:[#allocation3 + %s239]]
        %s241 = sadd.s32 %s225, 10
        %s242 = sld [smem:[#allocation3 + %s241]]
        %s243 = sadd.s32 %s225, 9
        %s244 = sld [smem:[#allocation3 + %s243]]
        %s245 = smul.f32 %s240, -7.5
        %s246 = smul.f32 %s242, 0.5
        %s247 = sadd.f32 %s245, %s246
        %s248 = sadd.s32 %s225, 11
        %s249 = sld [smem:[#allocation3 + %s248]]
        %s250 = sadd.f32 %s247, %s249
        %s251 = ssub.f32 %s250, 0.5
        %v252 = vlaneseq
        %v253 = vand.u32 %v252, 127
        %v254 = vadd.s32 %v253, 128
        %s255 = smul.u32 %s32, 256
        %v256 = vstv %s255
        %v257 = vadd.s32 %v256, %v253
        %v258 = vadd.s32 %v256, %v254
        %v259 = vcvt.s32.f32 %v257
        %v260 = vcvt.s32.f32 %v258
        %v261 = vmul.f32 %v259, 0.0625
        %v262 = vmul.f32 %v260, 0.0625
        %v263 = vfloor.f32 %v261
        %v264 = vfloor.f32 %v262
        %v265 = vmul.f32 %v263, 16.0
        %v266 = vmul.f32 %v264, 16.0
        %v267 = vsub.f32 %v259, %v265
        %v268 = vsub.f32 %v260, %v266
        %vm269 = vcmp.lt.f32.partialorder %v267, 0.0
        %vm270 = vcmp.lt.f32.partialorder %v268, 0.0
        %v271 = vsub.f32 %v263, 1.0
        %v272 = vsub.f32 %v264, 1.0
        %v273 = vsel %vm269, %v271, %v263
        %v274 = vsel %vm270, %v272, %v264
        %v275 = vadd.f32 %v267, 16.0
        %v276 = vadd.f32 %v268, 16.0
        %v277 = vsel %vm269, %v275, %v267
        %v278 = vsel %vm270, %v276, %v268
        %vm279 = vcmp.ge.f32.partialorder %v277, 16.0
        %vm280 = vcmp.ge.f32.partialorder %v278, 16.0
        %v281 = vadd.f32 %v273, 1.0
        %v282 = vadd.f32 %v274, 1.0
        %v283 = vsel %vm279, %v281, %v273
        %v284 = vsel %vm280, %v282, %v274
        %v285 = vsub.f32 %v277, 16.0
        %v286 = vsub.f32 %v278, 16.0
        %v287 = vsel %vm279, %v285, %v277
        %v288 = vsel %vm280, %v286, %v278
        %v289 = vld [vmem:[%s188] sm:$0x3]
        %v290 = vstv %s226
        %v291 = vmul.f32 %v290, %v287
        %v292 = vmul.f32 %v290, %v288
        %v293 = vstv %s228
        %v294 = vmul.f32 %v293, %v283
        %v295 = vmul.f32 %v293, %v284
        %v296 = vadd.f32 %v291, %v294
        %v297 = vadd.f32 %v292, %v295
        %v298 = vstv %s230
        %v299 = vmul.f32 %v298, %v289
        %v301 = vlaneseq
        %v302 = vshrl.u32 %v301, 7
        %v303 = vsub.s32 0, %v302
        %v304 = vrot.slane %v299, %v303
        %v305 = vlaneseq
        %v306 = vshrl.u32 %v305, 7
        %v307 = vsub.s32 1, %v306
        %v308 = vrot.slane %v299, %v307
        %v311 = vadd.f32 %v296, %v304
        %v312 = vadd.f32 %v297, %v308
        %v313 = vstv %s238
        %v314 = vadd.f32 %v311, %v313
        %v315 = vadd.f32 %v312, %v313
        %v316 = vstv %s240
        %v317 = vmul.f32 %v316, %v287
        %v318 = vmul.f32 %v316, %v288
        %v319 = vstv %s242
        %v320 = vmul.f32 %v319, %v283
        %v321 = vmul.f32 %v319, %v284
        %v322 = vadd.f32 %v317, %v320
        %v323 = vadd.f32 %v318, %v321
        %v324 = vstv %s244
        %v325 = vmul.f32 %v324, %v289
        %v327 = vlaneseq
        %v328 = vshrl.u32 %v327, 7
        %v329 = vsub.s32 0, %v328
        %v330 = vrot.slane %v325, %v329
        %v331 = vlaneseq
        %v332 = vshrl.u32 %v331, 7
        %v333 = vsub.s32 1, %v332
        %v334 = vrot.slane %v325, %v333
        %v337 = vadd.f32 %v322, %v330
        %v338 = vadd.f32 %v323, %v334
        %v339 = vstv %s251
        %v340 = vadd.f32 %v337, %v339
        %v341 = vadd.f32 %v338, %v339
        %v342 = vld [vmem:[%s197] sm:$0xff]
        %v343 = vld [vmem:[%s197 + $0x8] sm:$0xff]
        %v344 = vlaneseq
        %v345 = vshrl.u32 %v344, 7
        %v346 = vadd.s32 %v345, 8
        %v347 = vcvt.s32.f32 %v345
        %v348 = vcvt.s32.f32 %v346
        %v349 = vlaneseq
        %v350 = vshrl.u32 %v349, 7
        %v351 = vsub.s32 0, %v350
        %v352 = vrot.slane %v314, %v351
        %v353 = vlaneseq
        %v354 = vshrl.u32 %v353, 7
        %v355 = vsub.s32 0, %v354
        %v356 = vrot.slane %v315, %v355
        %v357 = vsub.f32 %v352, %v347
        %v358 = vsub.f32 %v356, %v347
        %v359 = vsub.f32 %v352, %v348
        %v360 = vsub.f32 %v356, %v348
        %v361 = vand.u32 2147483647, %v357
        %v362 = vand.u32 2147483647, %v358
        %v363 = vand.u32 2147483647, %v359
        %v364 = vand.u32 2147483647, %v360
        %v365 = vsub.f32 1.0, %v361
        %v366 = vsub.f32 1.0, %v362
        %v367 = vsub.f32 1.0, %v363
        %v368 = vsub.f32 1.0, %v364
        %v369 = vmax.f32 %v365, 0.0
        %v370 = vmax.f32 %v366, 0.0
        %v371 = vmax.f32 %v367, 0.0
        %v372 = vmax.f32 %v368, 0.0
        %vm373 = vcmask 130048
        %v375 = vsel %vm373, %v342, 0
        %v378 = vsel %vm373, %v343, 0
        %380 = vmatprep.subr.mxu0 %v370
        %381 = vmatpush1.msra.mxu0 %v369
        %382 = vmatprep.subr.mxu0 %v372
        %383 = vmatpush1.msra.mxu0 %v371
        %384 = vmatprep.subr.mxu0 0.0
        %385 = vmatpush1.msra.mxu0 0.0
        %386 = vmatprep.subr.mxu0 0.0
        %387 = vmatpush1.msra.mxu0 0.0
        %388 = vmatprep.subr.mxu0 0.0
        %389 = vmatpush1.msra.mxu0 0.0
        %390 = vmatprep.subr.mxu0 0.0
        %391 = vmatpush1.msra.mxu0 0.0
        %392 = vmatprep.subr.mxu0 0.0
        %393 = vmatpush1.msra.mxu0 0.0
        %394 = vmatprep.subr.mxu0 0.0
        %395 = vmatpush1.msra.mxu0 0.0
        %396 = vmatprep.subr.mxu0 0.0
        %397 = vmatpush1.msra.mxu0 0.0
        %398 = vmatprep.subr.mxu0 0.0
        %399 = vmatpush1.msra.mxu0 0.0
        %400 = vmatprep.subr.mxu0 0.0
        %401 = vmatpush1.msra.mxu0 0.0
        %402 = vmatprep.subr.mxu0 0.0
        %403 = vmatpush1.msra.mxu0 0.0
        %404 = vmatprep.subr.mxu0 0.0
        %405 = vmatpush1.msra.mxu0 0.0
        %406 = vmatprep.subr.mxu0 0.0
        %407 = vmatpush1.msra.mxu0 0.0
        %408 = vmatprep.subr.mxu0 0.0
        %409 = vmatpush1.msra.mxu0 0.0
        %410 = vmatprep.subr.mxu0 0.0
        %411 = vmatpush1.msra.mxu0 0.0
        %412 = vmatprep.subr.mxu0 0.0
        %413 = vmatpush1.msra.mxu0 0.0
        %414 = vmatprep.subr.mxu0 0.0
        %415 = vmatpush1.msra.mxu0 0.0
        %416 = vmatprep.subr.mxu0 0.0
        %417 = vmatpush1.msra.mxu0 0.0
        %418 = vmatprep.subr.mxu0 0.0
        %419 = vmatpush1.msra.mxu0 0.0
        %420 = vmatprep.subr.mxu0 0.0
        %421 = vmatpush1.msra.mxu0 0.0
        %422 = vmatprep.subr.mxu0 0.0
        %423 = vmatpush1.msra.mxu0 0.0
        %424 = vmatprep.subr.mxu0 0.0
        %425 = vmatpush1.msra.mxu0 0.0
        %426 = vmatprep.subr.mxu0 0.0
        %427 = vmatpush1.msra.mxu0 0.0
        %428 = vmatprep.subr.mxu0 0.0
        %429 = vmatpush1.msra.mxu0 0.0
        %430 = vmatprep.subr.mxu0 0.0
        %431 = vmatpush1.msra.mxu0 0.0
        %432 = vmatprep.subr.mxu0 0.0
        %433 = vmatpush1.msra.mxu0 0.0
        %434 = vmatprep.subr.mxu0 0.0
        %435 = vmatpush1.msra.mxu0 0.0
        %436 = vmatprep.subr.mxu0 0.0
        %437 = vmatpush1.msra.mxu0 0.0
        %438 = vmatprep.subr.mxu0 0.0
        %439 = vmatpush1.msra.mxu0 0.0
        %440 = vmatprep.subr.mxu0 0.0
        %441 = vmatpush1.msra.mxu0 0.0
        %442 = vmatprep.subr.mxu0 0.0
        %443 = vmatpush1.msra.mxu0 0.0
        %444 = vmatprep.mubr.f32.mxu0 0.0
        %445 = vmatmul.mubr.f32.gmra.mrb[0].mxu0 %v375
        %v446 = vpop.f32.mrb[0].mxu0
        %v447 = vadd.f32 0.0, %v446
        %v448 = vpop.f32.mrb[0].mxu0
        %v449 = vadd.f32 0.0, %v448
        %450 = vmatprep.mubr.f32.mxu0 0.0
        %451 = vmatmul.mubr.f32.gmra.mrb[0].mxu0 %v378
        %v452 = vpop.f32.mrb[0].mxu0
        %v453 = vadd.f32 0.0, %v452
        %v454 = vpop.f32.mrb[0].mxu0
        %v455 = vadd.f32 0.0, %v454
        %456 = vdwg.mxu0
        %v457 = vlaneseq
        %v458 = vshrl.u32 %v457, 7
        %v459 = vsub.s32 0, %v458
        %v460 = vrot.slane %v340, %v459
        %v461 = vlaneseq
        %v462 = vshrl.u32 %v461, 7
        %v463 = vsub.s32 0, %v462
        %v464 = vrot.slane %v341, %v463
        %v465 = vsub.f32 %v460, %v347
        %v466 = vsub.f32 %v464, %v347
        %v467 = vsub.f32 %v460, %v348
        %v468 = vsub.f32 %v464, %v348
        %v469 = vand.u32 2147483647, %v465
        %v470 = vand.u32 2147483647, %v466
        %v471 = vand.u32 2147483647, %v467
        %v472 = vand.u32 2147483647, %v468
        %v473 = vsub.f32 1.0, %v469
        %v474 = vsub.f32 1.0, %v470
        %v475 = vsub.f32 1.0, %v471
        %v476 = vsub.f32 1.0, %v472
        %v477 = vmax.f32 %v473, 0.0
        %v478 = vmax.f32 %v474, 0.0
        %v479 = vmax.f32 %v475, 0.0
        %v480 = vmax.f32 %v476, 0.0
        %v481 = vmul.f32 %v477, %v447
        %v482 = vmul.f32 %v478, %v449
        %v483 = vmul.f32 %v479, %v453
        %v484 = vmul.f32 %v480, %v455
        %v485 = vadd.f32 %v481, %v483
        %v486 = vrot.slane %v485, 4
        %v487 = vadd.f32 %v485, %v486
        %v488 = vrot.slane %v487, 2
        %v489 = vadd.f32 %v487, %v488
        %v490 = vrot.slane %v489, 1
        %v491 = vadd.f32 %v489, %v490
        %v492 = vadd.f32 %v482, %v484
        %v493 = vrot.slane %v492, 4
        %v494 = vadd.f32 %v492, %v493
        %v495 = vrot.slane %v494, 2
        %v496 = vadd.f32 %v494, %v495
        %v497 = vrot.slane %v496, 1
        %v498 = vadd.f32 %v496, %v497
        %v501 = vcombine.low %v491, %v498
        %v503 = vunpack.c.l.s4 1966171168
        %v504 = vunpack.c.0.s8 %v503
        %v505 = vlaneseq
        %v506 = vshrl.u32 %v505, 7
        %v507 = vsub.s32 %v504, %v506
        %v508 = vrot.slane %v501, %v507
        %v510 = vunpack.c.l.s4 1966171168
        %v511 = vunpack.c.0.s8 %v510
        %v512 = vlaneseq
        %v513 = vshrl.u32 %v512, 7
        %v514 = vsub.s32 %v511, %v513
        %v515 = vrot.slane %v508, %v514
        %v517 = vlaneseq
        %vm518 = vcmp.ge.s32.totalorder %v517, 0
        %vm519 = vcmp.lt.s32.totalorder %v517, 256
        %vm520 = vmand %vm518, %vm519
        %521 = vst.msk [vmem:[%s222] sm:$0x3] %vm520, %v515
        %s522 = sand.u32 %s103, 1
        %s523 = scalar_lea.sflag [#allocation6], %s522
        %s524 = sand.u32 %s103, 1
        %s525 = smul.addr %s524, 2
        %s526 = scalar_lea.vmem [#allocation9], %s525
        // Predicated region
        $region37: #{tpu_custom_call.1} parent=27 // pred_check
          %p527 = pneg %p113
        $region38: #{tpu_custom_call.1} parent=27 // pred_check_branch
          %529 = sbr.rel (%p527) target = $region40
        $region39: #{tpu_custom_call.1} parent=27 // pred_region
          %s530 = smul.u32 2, %s32
          %s532 = ssub.s32 32, 32
          %533 = vsyncadd %s523, %s532
          %s534 = smul.addr %s31, 2
          %s535 = sadd.s32 %s530, %s534
          %s536 = smul.addr %s535, 16
          %s537 = scalar_lea.hbm %s3, %s536
          %s539 = sshll.u32 %s526, 4
          %s540 = int_to_ptr.vmem [resolvable:$true] %s539
          %542 = dma.vmem_to_hbm [thread:$0]  %s540, 32, %s537, %s523
        $region40: #{tpu_custom_call.1} parent=27 // pred_fallthru
          _
      $region28: #{tpu_custom_call.1} parent=5 // pred_fallthru
        _
      %p543 = scmp.le.s32.totalorder 2, %s22
      // Predicated region
      $region41: #{tpu_custom_call.1} parent=5 // pred_check
        %p544 = pneg %p543
      $region42: #{tpu_custom_call.1} parent=5 // pred_check_branch
        %546 = sbr.rel (%p544) target = $region44
      $region43: #{tpu_custom_call.1} parent=5 // pred_region
        %s547 = ssub.s32 %s22, 2
        // Predicated region
        $region45: #{tpu_custom_call.1} parent=43 // pred_check
          %p548 = pneg %p119
        $region46: #{tpu_custom_call.1} parent=43 // pred_check_branch
          %550 = sbr.rel (%p548) target = $region48
        $region47: #{tpu_custom_call.1} parent=43 // pred_region
          %s551 = sand.u32 %s104, 1
          %s552 = scalar_lea.sflag [#allocation6], %s551
          %s553 = sand.u32 %s104, 1
          %s554 = smul.addr %s553, 2
          %s555 = scalar_lea.vmem [#allocation9], %s554
          %556 = dma.done %s552, 32
        $region48: #{tpu_custom_call.1} parent=43 // pred_fallthru
          _
      $region44: #{tpu_custom_call.1} parent=5 // pred_fallthru
        _
    $region6: #{tpu_custom_call.1} parent=1 // loop_footer
      %s26 = sadd.s32 1, %s22
    $region7: #{tpu_custom_call.1} parent=1 // loop_footer_branch
      %21 = sbr.rel target = $region3
    $region8: #{tpu_custom_call.1} parent=1 // loop_exit
      _
    %557 = vsyncpa [#allocation5], 1
    %s558 = scalar_lea.sflag [#allocation5], 1
    %559 = vsyncpa %s558, 1
    %560 = vsyncpa [#allocation8], 1
    %s561 = scalar_lea.sflag [#allocation8], 1
    %562 = vsyncpa %s561, 1
    %563 = vsyncpa [#allocation6], 1
    %s564 = scalar_lea.sflag [#allocation6], 1
    %565 = vsyncpa %s564, 1

</llo_original>
